<compile_context>
chip_gen: v6e
topology: v6e:2x2x1
jax: 0.10.0
libtpu: 0.0.40
codegen_flags: <defaults>
</compile_context>

<pallas_src>
import functools

import jax
import jax.numpy as jnp
from jax.experimental import pallas as pl
from jax.experimental.pallas import tpu as pltpu

LANE = 128
SUBLANE = 8
NEG_INF = -1e30  # large finite negative; -inf risks (-inf)-(-inf)=NaN in degenerate rows


def _round_up(n, m):
    return ((n + m - 1) // m) * m


def _cdiv(a, b):
    return (a + b - 1) // b


def mlp_kernel(x_ref, w1_ref, b1_ref, w2_ref, b2_ref, w3_ref, b3_ref, out_ref):
    # x tile and weights are bf16 (MXU-native, half the DMA); accumulation, bias,
    # ReLU and the log_softmax reduction all stay in f32.
    x = x_ref[...]

    # fc1 + ReLU
    h1 = jnp.dot(x, w1_ref[...], preferred_element_type=jnp.float32) + b1_ref[...]
    h1 = jnp.maximum(h1, 0.0)

    # fc2 + ReLU
    h2 = jnp.dot(h1.astype(jnp.bfloat16), w2_ref[...],
                 preferred_element_type=jnp.float32) + b2_ref[...]
    h2 = jnp.maximum(h2, 0.0)

    # fc3 + log_softmax. Padded output lanes: w3's padded columns are zero and b3's
    # padded lanes hold -1e30, so those logits are exactly -1e30 and drop out of the
    # max / exp-sum with no in-kernel masking work.
    z = jnp.dot(h2.astype(jnp.bfloat16), w3_ref[...],
                preferred_element_type=jnp.float32) + b3_ref[...]

    m = jnp.max(z, axis=1, keepdims=True)
    shifted = z - m
    lse = jnp.log(jnp.sum(jnp.exp(shifted), axis=1, keepdims=True))
    out_ref[...] = (shifted - lse).astype(out_ref.dtype)


def _choose_batch_tiling(B, tb):
    """Pick (TB, B_pad, n_tiles) minimizing zero-row padding.

    B is padded only to the 8-row sublane (e.g. B=300, tb=512 -> one 304-row tile,
    not 512).  When the batch gives both v7x TensorCores at least a full 256-row
    slab we force >= 2 tiles so the 1-D "parallel" grid can be megacore-sharded.
    """
    B_sub = _round_up(B, SUBLANE)
    n_tiles = max(1, _cdiv(B_sub, tb))
    if n_tiles == 1 and B_sub >= 2 * 256:
        n_tiles = 2
    TB = _round_up(_cdiv(B_sub, n_tiles), SUBLANE)
    return TB, n_tiles * TB, n_tiles


def mynet_forward(x, padded_params, output_size, *, tb=512, out_dtype=jnp.float32):
    """Pallas implementation of MyNet.forward (return_features=False path).

    `padded_params` are lane-padded bf16 weights / f32 biases (see pad_params);
    `output_size` is the logical number of classes. Returns (B, output_size)
    log-probabilities in `out_dtype` (f32 by default; pass bf16 to halve writeback).
    """
    w1, b1, w2, b2, w3, b3 = padded_params
    B, in_size = x.shape
    op = w3.shape[1]  # padded output width (multiple of 128)

    TB, B_pad, n_tiles = _choose_batch_tiling(B, tb)
    x = x.astype(jnp.bfloat16)  # halve per-tile x DMA; MXU-native operand
    if B_pad != B:
        x = jnp.pad(x, ((0, B_pad - B), (0, 0)))

    h1p, h2p = w1.shape[1], w2.shape[1]
    out_bytes_per_el = jnp.dtype(out_dtype).itemsize

    # VMEM budget: double-buffered x / out tiles + (double-buffered) resident weights.
    nbytes = lambda a: a.size * a.dtype.itemsize
    tile_bytes = 2 * (TB * in_size * 2 + TB * op * out_bytes_per_el)
    weight_bytes = 2 * sum(nbytes(a) for a in (w1, b1, w2, b2, w3, b3))
    vmem_limit = int(min(max(tile_bytes + weight_bytes + (4 << 20), 32 << 20), 64 << 20))

    flops = 2 * B_pad * (in_size * h1p + h1p * h2p + h2p * op)
    cost = pl.CostEstimate(
        flops=flops,
        transcendentals=B_pad * (output_size + 1),  # logical exp-per-logit + log-per-row
        bytes_accessed=x.size * 2 + weight_bytes // 2 + B_pad * op * out_bytes_per_el,
    )

    batch_spec = lambda shape: pl.BlockSpec(shape, lambda i: (i, 0))
    # Constant index_map -> weights/biases stay VMEM-resident across the batch grid.
    resident = lambda shape: pl.BlockSpec(shape, lambda i: (0, 0))

    out_padded = pl.pallas_call(
        mlp_kernel,
        out_shape=jax.ShapeDtypeStruct((B_pad, op), out_dtype),
        grid=(n_tiles,),
        in_specs=[
            batch_spec((TB, in_size)),
            resident(w1.shape), resident(b1.shape),
            resident(w2.shape), resident(b2.shape),
            resident(w3.shape), resident(b3.shape),
        ],
        out_specs=batch_spec((TB, op)),
        compiler_params=pltpu.CompilerParams(
            dimension_semantics=("parallel",),
            vmem_limit_bytes=vmem_limit,
        ),
        cost_estimate=cost,
    )(x, w1, b1, w2, b2, w3, b3)

    return out_padded[:B, :output_size]


def init_params(key, input_size, hidden1, hidden2, output_size):
    """Deterministic init mirroring nn.Linear shapes, stored as (in, out), f32."""
    ks = jax.random.split(key, 6)

    def lin(kw, kb, fan_in, fan_out):
        bound = 1.0 / jnp.sqrt(fan_in)
        w = jax.random.uniform(kw, (fan_in, fan_out), jnp.float32, -bound, bound)
        b = jax.random.uniform(kb, (1, fan_out), jnp.float32, -bound, bound)
        return w, b

    w1, b1 = lin(ks[0], ks[1], input_size, hidden1)
    w2, b2 = lin(ks[2], ks[3], hidden1, hidden2)
    w3, b3 = lin(ks[4], ks[5], hidden2, output_size)
    return (w1, b1, w2, b2, w3, b3)


def pad_params(params):
    """Pad feature dims to 128-lane multiples (once) and cast weights to bf16.

    Biases stay f32.  The padded lanes of b3 are filled with -1e30 so padded logits
    are huge-negative and the kernel needs no masking for log_softmax.
    """
    w1, b1, w2, b2, w3, b3 = params
    h1p = _round_up(w1.shape[1], LANE)
    h2p = _round_up(w2.shape[1], LANE)
    op = _round_up(w3.shape[1], LANE)

    def pad2(a, rows, cols, fill=0.0):
        return jnp.pad(a, ((0, rows - a.shape[0]), (0, cols - a.shape[1])),
                       constant_values=fill)

    w1p = pad2(w1, w1.shape[0], h1p).astype(jnp.bfloat16)
    b1p = pad2(b1, 1, h1p)
    w2p = pad2(w2, h1p, h2p).astype(jnp.bfloat16)   # padded h1 rows are zero -> no effect
    b2p = pad2(b2, 1, h2p)
    w3p = pad2(w3, h2p, op).astype(jnp.bfloat16)
    b3p = pad2(b3, 1, op, fill=NEG_INF)             # mask folded into the bias padding
    return (w1p, b1p, w2p, b2p, w3p, b3p)


def reference_forward_bf16(x, params):
    """JAX/XLA reference with the same bf16-operand / f32-accumulate matmuls."""
    w1, b1, w2, b2, w3, b3 = params
    bf = jnp.bfloat16

    def dot(a, w):
        return jnp.dot(a.astype(bf), w.astype(bf), preferred_element_type=jnp.float32)

    h1 = jnp.maximum(dot(x, w1) + b1, 0.0)
    h2 = jnp.maximum(dot(h1, w2) + b2, 0.0)
    z = dot(h2, w3) + b3
    return jax.nn.log_softmax(z, axis=1)


def reference_forward_f32(x, params):
    w1, b1, w2, b2, w3, b3 = params
    h1 = jnp.maximum(x @ w1 + b1, 0.0)
    h2 = jnp.maximum(h1 @ w2 + b2, 0.0)
    return jax.nn.log_softmax(h2 @ w3 + b3, axis=1)


if __name__ == "__main__":
    key = jax.random.PRNGKey(0)
    k_x, k_p = jax.random.split(key)

    B, input_size, hidden1, hidden2, output_size = 8, 32, 64, 64, 16
    x = jax.random.normal(k_x, (B, input_size), jnp.float32)
    params = init_params(k_p, input_size, hidden1, hidden2, output_size)
    padded = pad_params(params)  # pad + bf16-cast once at init, reuse across calls

    fwd = jax.jit(functools.partial(mynet_forward, output_size=output_size))
    out = jax.block_until_ready(fwd(x, padded))

    assert out.shape == (B, output_size)
    assert bool(jnp.all(jnp.isfinite(out)))

    ref_bf16 = reference_forward_bf16(x, params)   # apples-to-apples (same precision)
    ref_f32 = reference_forward_f32(x, params)     # loose sanity vs full-f32 math
    assert jnp.allclose(out, ref_bf16, atol=2e-3, rtol=2e-3), "mismatch vs bf16 reference"
    assert float(jnp.max(jnp.abs(out - ref_f32))) < 0.1, "too far from f32 reference"

    print("KERNEL_OK")
</pallas_src>

<mosaic_0001>
module attributes {stable_mosaic.version = 11 : i64} {
  func.func @mlp_kernel(%arg0: i32, %arg1: memref<8x32xbf16, #tpu.memory_space<vmem>>, %arg2: memref<32x128xbf16, #tpu.memory_space<vmem>>, %arg3: memref<1x128xf32, #tpu.memory_space<vmem>>, %arg4: memref<128x128xbf16, #tpu.memory_space<vmem>>, %arg5: memref<1x128xf32, #tpu.memory_space<vmem>>, %arg6: memref<128x128xbf16, #tpu.memory_space<vmem>>, %arg7: memref<1x128xf32, #tpu.memory_space<vmem>>, %arg8: memref<8x128xf32, #tpu.memory_space<vmem>>) attributes {dimension_semantics = [#tpu.dimension_semantics<parallel>], iteration_bounds = array<i64: 1>, scalar_prefetch = 0 : i64, scratch_operands = 0 : i64, tpu.core_type = #tpu.core_type<tc>, window_params = [{transform_indices = @transform_0, window_bounds = array<i64: 8, 32>}, {pipeline_mode = #tpu.pipeline_mode<synchronous>, transform_indices = @transform_1, window_bounds = array<i64: 32, 128>}, {pipeline_mode = #tpu.pipeline_mode<synchronous>, transform_indices = @transform_2, window_bounds = array<i64: 1, 128>}, {pipeline_mode = #tpu.pipeline_mode<synchronous>, transform_indices = @transform_3, window_bounds = array<i64: 128, 128>}, {pipeline_mode = #tpu.pipeline_mode<synchronous>, transform_indices = @transform_4, window_bounds = array<i64: 1, 128>}, {pipeline_mode = #tpu.pipeline_mode<synchronous>, transform_indices = @transform_5, window_bounds = array<i64: 128, 128>}, {pipeline_mode = #tpu.pipeline_mode<synchronous>, transform_indices = @transform_6, window_bounds = array<i64: 1, 128>}, {transform_indices = @transform_7, window_bounds = array<i64: 8, 128>}]} {
    %c0 = arith.constant 0 : index
    %c0_0 = arith.constant 0 : index
    %0 = vector.load %arg1[%c0, %c0_0] : memref<8x32xbf16, #tpu.memory_space<vmem>>, vector<8x32xbf16>
    %c0_1 = arith.constant 0 : index
    %c0_2 = arith.constant 0 : index
    %1 = vector.load %arg2[%c0_1, %c0_2] : memref<32x128xbf16, #tpu.memory_space<vmem>>, vector<32x128xbf16>
    %cst = arith.constant dense<0.000000e+00> : vector<8x128xf32>
    %2 = tpu.matmul %0, %1, %cst {dimension_numbers = #tpu.dot_dimension_numbers<[1], [0], [0], [1], [0, 0, 1, 1], [], []>} : vector<8x32xbf16>, vector<32x128xbf16>, vector<8x128xf32> -> vector<8x128xf32>
    %c0_3 = arith.constant 0 : index
    %c0_4 = arith.constant 0 : index
    %3 = vector.load %arg3[%c0_3, %c0_4] : memref<1x128xf32, #tpu.memory_space<vmem>>, vector<1x128xf32>
    %4 = vector.broadcast %3 : vector<1x128xf32> to vector<8x128xf32>
    %5 = arith.addf %2, %4 : vector<8x128xf32>
    %cst_5 = arith.constant 0.000000e+00 : f32
    %6 = vector.broadcast %cst_5 : f32 to vector<8x128xf32>
    %7 = arith.maximumf %5, %6 : vector<8x128xf32>
    %8 = arith.truncf %7 : vector<8x128xf32> to vector<8x128xbf16>
    %c0_6 = arith.constant 0 : index
    %c0_7 = arith.constant 0 : index
    %9 = vector.load %arg4[%c0_6, %c0_7] : memref<128x128xbf16, #tpu.memory_space<vmem>>, vector<128x128xbf16>
    %cst_8 = arith.constant dense<0.000000e+00> : vector<8x128xf32>
    %10 = tpu.matmul %8, %9, %cst_8 {dimension_numbers = #tpu.dot_dimension_numbers<[1], [0], [0], [1], [0, 0, 1, 1], [], []>} : vector<8x128xbf16>, vector<128x128xbf16>, vector<8x128xf32> -> vector<8x128xf32>
    %c0_9 = arith.constant 0 : index
    %c0_10 = arith.constant 0 : index
    %11 = vector.load %arg5[%c0_9, %c0_10] : memref<1x128xf32, #tpu.memory_space<vmem>>, vector<1x128xf32>
    %12 = vector.broadcast %11 : vector<1x128xf32> to vector<8x128xf32>
    %13 = arith.addf %10, %12 : vector<8x128xf32>
    %cst_11 = arith.constant 0.000000e+00 : f32
    %14 = vector.broadcast %cst_11 : f32 to vector<8x128xf32>
    %15 = arith.maximumf %13, %14 : vector<8x128xf32>
    %16 = arith.truncf %15 : vector<8x128xf32> to vector<8x128xbf16>
    %c0_12 = arith.constant 0 : index
    %c0_13 = arith.constant 0 : index
    %17 = vector.load %arg6[%c0_12, %c0_13] : memref<128x128xbf16, #tpu.memory_space<vmem>>, vector<128x128xbf16>
    %cst_14 = arith.constant dense<0.000000e+00> : vector<8x128xf32>
    %18 = tpu.matmul %16, %17, %cst_14 {dimension_numbers = #tpu.dot_dimension_numbers<[1], [0], [0], [1], [0, 0, 1, 1], [], []>} : vector<8x128xbf16>, vector<128x128xbf16>, vector<8x128xf32> -> vector<8x128xf32>
    %c0_15 = arith.constant 0 : index
    %c0_16 = arith.constant 0 : index
    %19 = vector.load %arg7[%c0_15, %c0_16] : memref<1x128xf32, #tpu.memory_space<vmem>>, vector<1x128xf32>
    %20 = vector.broadcast %19 : vector<1x128xf32> to vector<8x128xf32>
    %21 = arith.addf %18, %20 : vector<8x128xf32>
    %cst_17 = arith.constant dense<0xFF800000> : vector<8xf32>
    %22 = vector.multi_reduction <maximumf>, %21, %cst_17 [1] : vector<8x128xf32> to vector<8xf32>
    %23 = vector.shape_cast %22 : vector<8xf32> to vector<8x1xf32>
    %24 = vector.broadcast %23 : vector<8x1xf32> to vector<8x128xf32>
    %25 = arith.subf %21, %24 : vector<8x128xf32>
    %26 = math.exp %25 : vector<8x128xf32>
    %cst_18 = arith.constant dense<0.000000e+00> : vector<8xf32>
    %27 = vector.multi_reduction <add>, %26, %cst_18 [1] : vector<8x128xf32> to vector<8xf32>
    %28 = vector.shape_cast %27 : vector<8xf32> to vector<8x1xf32>
    %29 = math.log %28 : vector<8x1xf32>
    %30 = vector.broadcast %29 : vector<8x1xf32> to vector<8x128xf32>
    %31 = arith.subf %25, %30 : vector<8x128xf32>
    %c0_19 = arith.constant 0 : index
    %c0_20 = arith.constant 0 : index
    %32 = vector.load %arg8[%c0_19, %c0_20] : memref<8x128xf32, #tpu.memory_space<vmem>>, vector<8x128xf32>
    tpu.vector_store %arg8[%c0_19, %c0_20], %31 {strides = array<i32>} : memref<8x128xf32, #tpu.memory_space<vmem>>, vector<8x128xf32>,
    return
  }
  func.func @transform_0(%arg0: i32) -> (i32, i32) {
    %c0_i32 = arith.constant 0 : i32
    %c0_i32_0 = arith.constant 0 : i32
    return %arg0, %c0_i32 : i32, i32
  }
  func.func @transform_1(%arg0: i32) -> (i32, i32) {
    %c0_i32 = arith.constant 0 : i32
    %c0_i32_0 = arith.constant 0 : i32
    %c0_i32_1 = arith.constant 0 : i32
    return %c0_i32, %c0_i32_0 : i32, i32
  }
  func.func @transform_2(%arg0: i32) -> (i32, i32) {
    %c0_i32 = arith.constant 0 : i32
    %c0_i32_0 = arith.constant 0 : i32
    %c0_i32_1 = arith.constant 0 : i32
    return %c0_i32, %c0_i32_0 : i32, i32
  }
  func.func @transform_3(%arg0: i32) -> (i32, i32) {
    %c0_i32 = arith.constant 0 : i32
    %c0_i32_0 = arith.constant 0 : i32
    %c0_i32_1 = arith.constant 0 : i32
    return %c0_i32, %c0_i32_0 : i32, i32
  }
  func.func @transform_4(%arg0: i32) -> (i32, i32) {
    %c0_i32 = arith.constant 0 : i32
    %c0_i32_0 = arith.constant 0 : i32
    %c0_i32_1 = arith.constant 0 : i32
    return %c0_i32, %c0_i32_0 : i32, i32
  }
  func.func @transform_5(%arg0: i32) -> (i32, i32) {
    %c0_i32 = arith.constant 0 : i32
    %c0_i32_0 = arith.constant 0 : i32
    %c0_i32_1 = arith.constant 0 : i32
    return %c0_i32, %c0_i32_0 : i32, i32
  }
  func.func @transform_6(%arg0: i32) -> (i32, i32) {
    %c0_i32 = arith.constant 0 : i32
    %c0_i32_0 = arith.constant 0 : i32
    %c0_i32_1 = arith.constant 0 : i32
    return %c0_i32, %c0_i32_0 : i32, i32
  }
  func.func @transform_7(%arg0: i32) -> (i32, i32) {
    %c0_i32 = arith.constant 0 : i32
    %c0_i32_0 = arith.constant 0 : i32
    return %arg0, %c0_i32 : i32, i32
  }
}

</mosaic_0001>

<llo_original>
// kernel: mynet_forward.1
$region0: #{mynet_forward.1}
  #allocation0 [shape = 'u32[]', space=smem, size = 0x4, offset = 0x4, fixed_abs, tag = 'smem constant byte address 0x4 - core index']
  #allocation1 [shape = 'u32[144,128]{1,0:T(1,128)}', space=vmem, size = 0x12000, scoped, tag = 'internal scratch']
  %s0 = inlined_call_operand.vmem [shape: bf16[8,32], index: 0, kind: input, shape index: {}]
  %s1 = inlined_call_operand.hbm [shape: bf16[32,128], index: 1, kind: input, shape index: {}]
  %s2 = inlined_call_operand.vmem [shape: f32[1,128], index: 2, kind: input, shape index: {}]
  %s3 = inlined_call_operand.hbm [shape: bf16[128,128], index: 3, kind: input, shape index: {}]
  %s4 = inlined_call_operand.vmem [shape: f32[1,128], index: 4, kind: input, shape index: {}]
  %s5 = inlined_call_operand.hbm [shape: bf16[128,128], index: 5, kind: input, shape index: {}]
  %s6 = inlined_call_operand.vmem [shape: f32[1,128], index: 6, kind: input, shape index: {}]
  %s7 = inlined_call_operand.hbm [shape: f32[8,128], index: 7, kind: output, shape index: {}]
  %s8 = sld [smem:[#allocation0]]
  $region50: #{mynet_forward.1} parent=0
    _
  %s10 = ssub.s32 1, %s8
  %s11 = scalar_select 0, %s10, %s8
  $region1: #{mynet_forward.1} parent=0
    #allocation2 [shape = 'u8[8192]{0}', space=vmem, size = 0x2000, scoped, tag = 'input window, operand 1, single buffered']
    #allocation3 [shape = 's32[1]{0}', space=sflag, size = 0x4, scoped, tag = 'scoped memory for mynet_forward.1']
    #allocation4 [shape = 's32[1]{0}', space=sflag, size = 0x4, scoped, tag = 'scoped memory for mynet_forward.1']
    #allocation5 [shape = 'u8[32768]{0}', space=vmem, size = 0x8000, scoped, tag = 'input window, operand 3, single buffered']
    #allocation6 [shape = 's32[1]{0}', space=sflag, size = 0x4, scoped, tag = 'scoped memory for mynet_forward.1']
    #allocation7 [shape = 'u8[32768]{0}', space=vmem, size = 0x8000, scoped, tag = 'input window, operand 5, single buffered']
    #allocation8 [shape = 'u8[4096]{0}', space=vmem, size = 0x1000, scoped, tag = 'output window, operand 0, single buffered']
    %12 = vsyncpa [#allocation3], 0
    %13 = vsyncpa [#allocation6], 0
    %14 = vsyncpa [#allocation4], 0
    // Predicated region
    $region2: #{mynet_forward.1} parent=1 // pred_check
      _
    $region3: #{mynet_forward.1} parent=1 // pred_check_branch
      %16 = sbr.rel (0) target = $region5
    $region4: #{mynet_forward.1} parent=1 // pred_region
      _
    $region5: #{mynet_forward.1} parent=1 // pred_fallthru
      _
    // Predicated region
    $region6: #{mynet_forward.1} parent=1 // pred_check
      _
    $region7: #{mynet_forward.1} parent=1 // pred_check_branch
      %18 = sbr.rel (0) target = $region9
    $region8: #{mynet_forward.1} parent=1 // pred_region
      %s20 = ssub.s32 256, 256
      %21 = vsyncadd [#allocation3], %s20
      %s22 = sshll.u32 [#allocation2], 4
      %s23 = int_to_ptr.vmem [resolvable:$true] %s22
      %28 = dma.hbm_to_vmem [thread:$0]  %s1, 256, %s23, [#allocation3], 64, 64, 4
    $region9: #{mynet_forward.1} parent=1 // pred_fallthru
      _
    // Predicated region
    $region10: #{mynet_forward.1} parent=1 // pred_check
      _
    $region11: #{mynet_forward.1} parent=1 // pred_check_branch
      %30 = sbr.rel (0) target = $region13
    $region12: #{mynet_forward.1} parent=1 // pred_region
      _
    $region13: #{mynet_forward.1} parent=1 // pred_fallthru
      _
    // Predicated region
    $region14: #{mynet_forward.1} parent=1 // pred_check
      _
    $region15: #{mynet_forward.1} parent=1 // pred_check_branch
      %32 = sbr.rel (0) target = $region17
    $region16: #{mynet_forward.1} parent=1 // pred_region
      %s34 = ssub.s32 1024, 1024
      %35 = vsyncadd [#allocation6], %s34
      %s36 = sshll.u32 [#allocation5], 4
      %s37 = int_to_ptr.vmem [resolvable:$true] %s36
      %42 = dma.hbm_to_vmem [thread:$0]  %s3, 1024, %s37, [#allocation6], 64, 64, 4
    $region17: #{mynet_forward.1} parent=1 // pred_fallthru
      _
    // Predicated region
    $region18: #{mynet_forward.1} parent=1 // pred_check
      _
    $region19: #{mynet_forward.1} parent=1 // pred_check_branch
      %44 = sbr.rel (0) target = $region21
    $region20: #{mynet_forward.1} parent=1 // pred_region
      _
    $region21: #{mynet_forward.1} parent=1 // pred_fallthru
      _
    // Predicated region
    $region22: #{mynet_forward.1} parent=1 // pred_check
      _
    $region23: #{mynet_forward.1} parent=1 // pred_check_branch
      %46 = sbr.rel (0) target = $region25
    $region24: #{mynet_forward.1} parent=1 // pred_region
      %s48 = ssub.s32 1024, 1024
      %49 = vsyncadd [#allocation6], %s48
      %s50 = sshll.u32 [#allocation7], 4
      %s51 = int_to_ptr.vmem [resolvable:$true] %s50
      %56 = dma.hbm_to_vmem [thread:$0]  %s5, 1024, %s51, [#allocation6], 64, 64, 4
    $region25: #{mynet_forward.1} parent=1 // pred_fallthru
      _
    // Predicated region
    $region26: #{mynet_forward.1} parent=1 // pred_check
      _
    $region27: #{mynet_forward.1} parent=1 // pred_check_branch
      %58 = sbr.rel (0) target = $region29
    $region28: #{mynet_forward.1} parent=1 // pred_region
      _
    $region29: #{mynet_forward.1} parent=1 // pred_fallthru
      _
    // Predicated region
    $region30: #{mynet_forward.1} parent=1 // pred_check
      _
    $region31: #{mynet_forward.1} parent=1 // pred_check_branch
      %60 = sbr.rel (0) target = $region33
    $region32: #{mynet_forward.1} parent=1 // pred_region
      %61 = dma.done [#allocation3], 256
    $region33: #{mynet_forward.1} parent=1 // pred_fallthru
      _
    // Predicated region
    $region34: #{mynet_forward.1} parent=1 // pred_check
      _
    $region35: #{mynet_forward.1} parent=1 // pred_check_branch
      %63 = sbr.rel (0) target = $region37
    $region36: #{mynet_forward.1} parent=1 // pred_region
      %64 = dma.done [#allocation6], 1024
    $region37: #{mynet_forward.1} parent=1 // pred_fallthru
      _
    // Predicated region
    $region38: #{mynet_forward.1} parent=1 // pred_check
      _
    $region39: #{mynet_forward.1} parent=1 // pred_check_branch
      %66 = sbr.rel (0) target = $region41
    $region40: #{mynet_forward.1} parent=1 // pred_region
      %67 = dma.done [#allocation6], 1024
    $region41: #{mynet_forward.1} parent=1 // pred_fallthru
      _
    %v69 = vld [vmem:[%s0] sm:$0xf]
    %v70 = vld [vmem:[#allocation2] sm:$0xf]
    %v71 = vld [vmem:[#allocation2 + $0x4] sm:$0xf]
    %v72 = vld [vmem:[#allocation2 + $0x8] sm:$0xf]
    %v73 = vld [vmem:[#allocation2 + $0xc] sm:$0xf]
    %v74 = vld [vmem:[%s2] sm:$0x1]
    %v76 = vlaneseq
    %v77 = vshrl.u32 %v76, 7
    %v78 = vsub.s32 0, %v77
    %v79 = vrot.slane %v74, %v78
    %v85 = vunpack.c.l.b16 %v70
    %v86 = vunpack.c.l.b16 %v71
    %v87 = vunpack.c.l.b16 %v72
    %v88 = vunpack.c.l.b16 %v73
    %v89 = vpack.c.b16 %v86, %v85
    %v90 = vpack.c.b16 %v88, %v87
    %vm93 = vcmask 261120
    %v95 = vsel %vm93, %v69, 0
    %97 = vmatprep.subr.bf16.mxu0 0
    %98 = vmatpush1.bf16.msra.mxu0 0
    %99 = vmatprep.subr.bf16.mxu0 0
    %100 = vmatpush1.bf16.msra.mxu0 0
    %101 = vmatprep.subr.bf16.mxu0 0
    %102 = vmatpush1.bf16.msra.mxu0 0
    %103 = vmatprep.subr.bf16.mxu0 0
    %104 = vmatpush1.bf16.msra.mxu0 0
    %105 = vmatprep.subr.bf16.mxu0 0
    %106 = vmatpush1.bf16.msra.mxu0 0
    %107 = vmatprep.subr.bf16.mxu0 0
    %108 = vmatpush1.bf16.msra.mxu0 0
    %109 = vmatprep.subr.bf16.mxu0 0
    %110 = vmatpush1.bf16.msra.mxu0 %v90
    %111 = vmatprep.subr.bf16.mxu0 0
    %112 = vmatpush1.bf16.msra.mxu0 %v89
    %113 = vmatprep.subr.bf16.mxu0 0
    %114 = vmatpush2.bf16.msra.mxu0 0
    %115 = vmatprep.subr.bf16.mxu0 0
    %116 = vmatpush2.bf16.msra.mxu0 0
    %117 = vmatprep.subr.bf16.mxu0 0
    %118 = vmatpush2.bf16.msra.mxu0 0
    %119 = vmatprep.subr.bf16.mxu0 0
    %120 = vmatpush2.bf16.msra.mxu0 0
    %121 = vmatprep.subr.bf16.mxu0 0
    %122 = vmatpush2.bf16.msra.mxu0 0
    %123 = vmatprep.subr.bf16.mxu0 0
    %124 = vmatpush2.bf16.msra.mxu0 0
    %125 = vmatprep.subr.bf16.mxu0 0
    %126 = vmatpush2.bf16.msra.mxu0 0
    %127 = vmatprep.subr.bf16.mxu0 0
    %128 = vmatpush2.bf16.msra.mxu0 0
    %129 = vmatprep.mubr.bf16.mxu0 0
    %130 = vmatmul.mubr.bf16.gmra.mxu0 %v95
    %v131 = vpop.f32.mrf.mxu0
    %v132 = vadd.f32 %v79, %v131
    %v133 = vpop.f32.mrf.mxu0
    %v134 = vpop.f32.mrf.mxu0
    %v135 = vpop.f32.mrf.mxu0
    %136 = vdwg.mxu0
    %v137 = vmax.f32 %v132, 0.0
    %v138 = vpack.c.bf16 %v137, %v137
    %v139 = vld [vmem:[#allocation5] sm:$0xf]
    %v140 = vld [vmem:[#allocation5 + $0x4] sm:$0xf]
    %v141 = vld [vmem:[#allocation5 + $0x8] sm:$0xf]
    %v142 = vld [vmem:[#allocation5 + $0xc] sm:$0xf]
    %v143 = vld [vmem:[#allocation5 + $0x10] sm:$0xf]
    %v144 = vld [vmem:[#allocation5 + $0x14] sm:$0xf]
    %v145 = vld [vmem:[#allocation5 + $0x18] sm:$0xf]
    %v146 = vld [vmem:[#allocation5 + $0x1c] sm:$0xf]
    %v147 = vld [vmem:[#allocation5 + $0x20] sm:$0xf]
    %v148 = vld [vmem:[#allocation5 + $0x24] sm:$0xf]
    %v149 = vld [vmem:[#allocation5 + $0x28] sm:$0xf]
    %v150 = vld [vmem:[#allocation5 + $0x2c] sm:$0xf]
    %v151 = vld [vmem:[#allocation5 + $0x30] sm:$0xf]
    %v152 = vld [vmem:[#allocation5 + $0x34] sm:$0xf]
    %v153 = vld [vmem:[#allocation5 + $0x38] sm:$0xf]
    %v154 = vld [vmem:[#allocation5 + $0x3c] sm:$0xf]
    %v155 = vld [vmem:[%s4] sm:$0x1]
    %v157 = vlaneseq
    %v158 = vshrl.u32 %v157, 7
    %v159 = vsub.s32 0, %v158
    %v160 = vrot.slane %v155, %v159
    %v178 = vunpack.c.l.b16 %v139
    %v179 = vunpack.c.l.b16 %v140
    %v180 = vunpack.c.l.b16 %v141
    %v181 = vunpack.c.l.b16 %v142
    %v182 = vunpack.c.l.b16 %v143
    %v183 = vunpack.c.l.b16 %v144
    %v184 = vunpack.c.l.b16 %v145
    %v185 = vunpack.c.l.b16 %v146
    %v186 = vunpack.c.l.b16 %v147
    %v187 = vunpack.c.l.b16 %v148
    %v188 = vunpack.c.l.b16 %v149
    %v189 = vunpack.c.l.b16 %v150
    %v190 = vunpack.c.l.b16 %v151
    %v191 = vunpack.c.l.b16 %v152
    %v192 = vunpack.c.l.b16 %v153
    %v193 = vunpack.c.l.b16 %v154
    %v194 = vpack.c.b16 %v179, %v178
    %v195 = vpack.c.b16 %v181, %v180
    %v196 = vpack.c.b16 %v183, %v182
    %v197 = vpack.c.b16 %v185, %v184
    %v198 = vpack.c.b16 %v187, %v186
    %v199 = vpack.c.b16 %v189, %v188
    %v200 = vpack.c.b16 %v191, %v190
    %v201 = vpack.c.b16 %v193, %v192
    %210 = vmatprep.subr.bf16.mxu0 0
    %211 = vmatpush1.bf16.msra.mxu0 %v201
    %212 = vmatprep.subr.bf16.mxu0 0
    %213 = vmatpush1.bf16.msra.mxu0 %v200
    %214 = vmatprep.subr.bf16.mxu0 0
    %215 = vmatpush1.bf16.msra.mxu0 %v199
    %216 = vmatprep.subr.bf16.mxu0 0
    %217 = vmatpush1.bf16.msra.mxu0 %v198
    %218 = vmatprep.subr.bf16.mxu0 0
    %219 = vmatpush1.bf16.msra.mxu0 %v197
    %220 = vmatprep.subr.bf16.mxu0 0
    %221 = vmatpush1.bf16.msra.mxu0 %v196
    %222 = vmatprep.subr.bf16.mxu0 0
    %223 = vmatpush1.bf16.msra.mxu0 %v195
    %224 = vmatprep.subr.bf16.mxu0 0
    %225 = vmatpush1.bf16.msra.mxu0 %v194
    %226 = vmatprep.subr.bf16.mxu0 0
    %227 = vmatpush2.bf16.msra.mxu0 0
    %228 = vmatprep.subr.bf16.mxu0 0
    %229 = vmatpush2.bf16.msra.mxu0 0
    %230 = vmatprep.subr.bf16.mxu0 0
    %231 = vmatpush2.bf16.msra.mxu0 0
    %232 = vmatprep.subr.bf16.mxu0 0
    %233 = vmatpush2.bf16.msra.mxu0 0
    %234 = vmatprep.subr.bf16.mxu0 0
    %235 = vmatpush2.bf16.msra.mxu0 0
    %236 = vmatprep.subr.bf16.mxu0 0
    %237 = vmatpush2.bf16.msra.mxu0 0
    %238 = vmatprep.subr.bf16.mxu0 0
    %239 = vmatpush2.bf16.msra.mxu0 0
    %240 = vmatprep.subr.bf16.mxu0 0
    %241 = vmatpush2.bf16.msra.mxu0 0
    %242 = vmatprep.mubr.bf16.mxu0 0
    %243 = vmatmul.mubr.bf16.gmra.mxu0 %v138
    %v244 = vpop.f32.mrf.mxu0
    %v245 = vadd.f32 %v160, %v244
    %v246 = vpop.f32.mrf.mxu0
    %v247 = vpop.f32.mrf.mxu0
    %v248 = vpop.f32.mrf.mxu0
    %249 = vdwg.mxu0
    %v250 = vmax.f32 %v245, 0.0
    %v251 = vpack.c.bf16 %v250, %v250
    %v252 = vld [vmem:[#allocation7] sm:$0xf]
    %v253 = vld [vmem:[#allocation7 + $0x4] sm:$0xf]
    %v254 = vld [vmem:[#allocation7 + $0x8] sm:$0xf]
    %v255 = vld [vmem:[#allocation7 + $0xc] sm:$0xf]
    %v256 = vld [vmem:[#allocation7 + $0x10] sm:$0xf]
    %v257 = vld [vmem:[#allocation7 + $0x14] sm:$0xf]
    %v258 = vld [vmem:[#allocation7 + $0x18] sm:$0xf]
    %v259 = vld [vmem:[#allocation7 + $0x1c] sm:$0xf]
    %v260 = vld [vmem:[#allocation7 + $0x20] sm:$0xf]
    %v261 = vld [vmem:[#allocation7 + $0x24] sm:$0xf]
    %v262 = vld [vmem:[#allocation7 + $0x28] sm:$0xf]
    %v263 = vld [vmem:[#allocation7 + $0x2c] sm:$0xf]
    %v264 = vld [vmem:[#allocation7 + $0x30] sm:$0xf]
    %v265 = vld [vmem:[#allocation7 + $0x34] sm:$0xf]
    %v266 = vld [vmem:[#allocation7 + $0x38] sm:$0xf]
    %v267 = vld [vmem:[#allocation7 + $0x3c] sm:$0xf]
    %v268 = vld [vmem:[%s6] sm:$0x1]
    %v270 = vlaneseq
    %v271 = vshrl.u32 %v270, 7
    %v272 = vsub.s32 0, %v271
    %v273 = vrot.slane %v268, %v272
    %v291 = vunpack.c.l.b16 %v252
    %v292 = vunpack.c.l.b16 %v253
    %v293 = vunpack.c.l.b16 %v254
    %v294 = vunpack.c.l.b16 %v255
    %v295 = vunpack.c.l.b16 %v256
    %v296 = vunpack.c.l.b16 %v257
    %v297 = vunpack.c.l.b16 %v258
    %v298 = vunpack.c.l.b16 %v259
    %v299 = vunpack.c.l.b16 %v260
    %v300 = vunpack.c.l.b16 %v261
    %v301 = vunpack.c.l.b16 %v262
    %v302 = vunpack.c.l.b16 %v263
    %v303 = vunpack.c.l.b16 %v264
    %v304 = vunpack.c.l.b16 %v265
    %v305 = vunpack.c.l.b16 %v266
    %v306 = vunpack.c.l.b16 %v267
    %v307 = vpack.c.b16 %v292, %v291
    %v308 = vpack.c.b16 %v294, %v293
    %v309 = vpack.c.b16 %v296, %v295
    %v310 = vpack.c.b16 %v298, %v297
    %v311 = vpack.c.b16 %v300, %v299
    %v312 = vpack.c.b16 %v302, %v301
    %v313 = vpack.c.b16 %v304, %v303
    %v314 = vpack.c.b16 %v306, %v305
    %323 = vmatprep.subr.bf16.mxu0 0
    %324 = vmatpush1.bf16.msra.mxu0 %v314
    %325 = vmatprep.subr.bf16.mxu0 0
    %326 = vmatpush1.bf16.msra.mxu0 %v313
    %327 = vmatprep.subr.bf16.mxu0 0
    %328 = vmatpush1.bf16.msra.mxu0 %v312
    %329 = vmatprep.subr.bf16.mxu0 0
    %330 = vmatpush1.bf16.msra.mxu0 %v311
    %331 = vmatprep.subr.bf16.mxu0 0
    %332 = vmatpush1.bf16.msra.mxu0 %v310
    %333 = vmatprep.subr.bf16.mxu0 0
    %334 = vmatpush1.bf16.msra.mxu0 %v309
    %335 = vmatprep.subr.bf16.mxu0 0
    %336 = vmatpush1.bf16.msra.mxu0 %v308
    %337 = vmatprep.subr.bf16.mxu0 0
    %338 = vmatpush1.bf16.msra.mxu0 %v307
    %339 = vmatprep.subr.bf16.mxu0 0
    %340 = vmatpush2.bf16.msra.mxu0 0
    %341 = vmatprep.subr.bf16.mxu0 0
    %342 = vmatpush2.bf16.msra.mxu0 0
    %343 = vmatprep.subr.bf16.mxu0 0
    %344 = vmatpush2.bf16.msra.mxu0 0
    %345 = vmatprep.subr.bf16.mxu0 0
    %346 = vmatpush2.bf16.msra.mxu0 0
    %347 = vmatprep.subr.bf16.mxu0 0
    %348 = vmatpush2.bf16.msra.mxu0 0
    %349 = vmatprep.subr.bf16.mxu0 0
    %350 = vmatpush2.bf16.msra.mxu0 0
    %351 = vmatprep.subr.bf16.mxu0 0
    %352 = vmatpush2.bf16.msra.mxu0 0
    %353 = vmatprep.subr.bf16.mxu0 0
    %354 = vmatpush2.bf16.msra.mxu0 0
    %355 = vmatprep.mubr.bf16.mxu0 0
    %356 = vmatmul.mubr.bf16.gmra.mxu0 %v251
    %v357 = vpop.f32.mrf.mxu0
    %v358 = vadd.f32 %v273, %v357
    %v359 = vpop.f32.mrf.mxu0
    %v360 = vpop.f32.mrf.mxu0
    %v361 = vpop.f32.mrf.mxu0
    %362 = vdwg.mxu0
    %363 = vmax.xlane.f32.xlu0 %v358
    %v364 = vpop.xlane.xlu0 %363
    %v365 = vsub.f32 %v358, %v364
    %v366 = vmul.f32 %v365, 1.442695
    %v367 = vpow.pop %v366
    %368 = vadd.xlane.f32.xlu0 %v367
    %v369 = vpop.xlane.xlu0 %368
    %v370 = vlog2.pop %v369
    %v371 = vmul.f32 %v370, 0.6931472
    %v372 = vsub.f32 %v365, %v371
    %373 = vst [vmem:[#allocation8] sm:$0xff] %v372
    // Predicated region
    $region42: #{mynet_forward.1} parent=1 // pred_check
      _
    $region43: #{mynet_forward.1} parent=1 // pred_check_branch
      %375 = sbr.rel (0) target = $region45
    $region44: #{mynet_forward.1} parent=1 // pred_region
      %s377 = ssub.s32 128, 128
      %378 = vsyncadd [#allocation4], %s377
      %s380 = sshll.u32 [#allocation8], 4
      %s381 = int_to_ptr.vmem [resolvable:$true] %s380
      %383 = dma.vmem_to_hbm [thread:$0]  %s381, 128, %s7, [#allocation4]
    $region45: #{mynet_forward.1} parent=1 // pred_fallthru
      _
    // Predicated region
    $region46: #{mynet_forward.1} parent=1 // pred_check
      _
    $region47: #{mynet_forward.1} parent=1 // pred_check_branch
      %385 = sbr.rel (0) target = $region49
    $region48: #{mynet_forward.1} parent=1 // pred_region
      %386 = dma.done [#allocation4], 128
    $region49: #{mynet_forward.1} parent=1 // pred_fallthru
      _
    %387 = vsyncpa [#allocation3], 1
    %388 = vsyncpa [#allocation6], 1
    %389 = vsyncpa [#allocation4], 1

</llo_original>
